<compile_context>
chip_gen: v7x
topology: tpu7x:2x2x1
jax: 0.10.0
libtpu: 0.0.40
codegen_flags: <defaults>
</compile_context>

<pallas_src>
import jax
import jax.numpy as jnp
from jax.experimental import pallas as pl
from jax.experimental.pallas import tpu as pltpu


def _round_up(x: int, m: int) -> int:
    return ((x + m - 1) // m) * m


def _tensorcores_per_chip() -> int:
    # Only v7x has 2 TensorCores per chip; everything else we target has 1.
    # Used to decide whether splitting the batch grid axis buys anything.
    try:
        kind = jax.devices()[0].device_kind.lower()
        if "v7" in kind or "7x" in kind:
            return 2
    except Exception:
        pass
    return 1


def critic_ppo_kernel(x_ref, w1_ref, b1_ref, w2_ref, b2_ref, w3_ref, b3_ref, o_ref):
    cdt = w1_ref.dtype  # MXU-input dtype (bf16 by default, f32 optional)

    # One XLU transpose of the small (tile_b, S) input tile makes every
    # activation (hidden, tile_b): fully packed lanes for the MXU/VPU.  The
    # bf16 cast of the only streamed operand is fused here (no extra HBM pass).
    xT = x_ref[...].T.astype(cdt)                                   # (S, tile_b)

    # Layer 1: (h1, S) @ (S, tile_b) -> (h1, tile_b), f32 accumulation.
    h = jnp.dot(w1_ref[...], xT, preferred_element_type=jnp.float32)
    h = jnp.maximum(h + b1_ref[...], 0.0)                           # bias+ReLU in f32

    # Layer 2: (h2, h1) @ (h1, tile_b).
    h = jnp.dot(w2_ref[...], h.astype(cdt), preferred_element_type=jnp.float32)
    h = jnp.maximum(h + b2_ref[...], 0.0)

    # Output layer: (1, h2) @ (h2, tile_b) -> lane-dense (1, tile_b) row.
    v = jnp.dot(w3_ref[...], h.astype(cdt), preferred_element_type=jnp.float32)
    o_ref[...] = (v + b3_ref[0]).astype(o_ref.dtype)


def critic_ppo_forward(state, params, *, tile_b=8192, compute_dtype=jnp.bfloat16):
    """state: [B, state_dim] (f32).  params: torch-layout weights (w_i [out,in], b_i [out])."""
    B, state_dim = state.shape
    w1, w2, w3 = params["w1"], params["w2"], params["w3"]
    b1, b2, b3 = params["b1"], params["b2"], params["b3"]
    h1, h2 = w1.shape[0], w2.shape[0]

    cdt = jnp.dtype(compute_dtype) if compute_dtype is not None else state.dtype
    # Weights are tiny (~25 KB total): casting them in the wrapper is free.
    w1 = w1.astype(cdt)
    w2 = w2.astype(cdt)
    w3 = w3.reshape(1, h2).astype(cdt)
    # Biases stay f32 (added to the f32 accumulator; keeps v5e's f32-only VPU happy).
    b1 = b1.reshape(h1, 1).astype(jnp.float32)
    b2 = b2.reshape(h2, 1).astype(jnp.float32)
    b3 = b3.reshape(1).astype(jnp.float32)

    # Tile selection: one big tile per TensorCore.  Large tiles amortize the
    # ~0.35us/step grid overhead; per-tile working set (f32 state tile + two
    # (64, tile_b) f32 intermediates + weights, double-buffered) stays far
    # under the scoped VMEM limit on v5e/v6e/v7x even at tile_b=8192.  Only
    # v7x (2 TCs) gains from >1 grid step, so the 2-way split is gated on it.
    min_tile = 128
    aligned_b = _round_up(B, min_tile)
    n_cores = _tensorcores_per_chip()
    cap = aligned_b if n_cores <= 1 else _round_up(pl.cdiv(aligned_b, n_cores), min_tile)
    tile = max(min_tile, min(int(tile_b), cap))
    padded_b = _round_up(B, tile)
    if padded_b != B:
        state = jnp.pad(state, ((0, padded_b - B), (0, 0)))
    grid = (padded_b // tile,)

    full = lambda shape: pl.BlockSpec(shape, lambda i: (0, 0))

    out = pl.pallas_call(
        critic_ppo_kernel,
        out_shape=jax.ShapeDtypeStruct((1, padded_b), jnp.float32),
        grid_spec=pltpu.PrefetchScalarGridSpec(
            num_scalar_prefetch=0,
            grid=grid,
            in_specs=[
                pl.BlockSpec((tile, state_dim), lambda i: (i, 0)),  # state tile (f32)
                full((h1, state_dim)),                              # w1 [out, in]
                full((h1, 1)),                                      # b1
                full((h2, h1)),                                     # w2 [out, in]
                full((h2, 1)),                                      # b2
                full((1, h2)),                                      # w3 [out=1, in]
                pl.BlockSpec(memory_space=pltpu.MemorySpace.SMEM),  # b3 scalar
            ],
            out_specs=pl.BlockSpec((1, tile), lambda i: (0, i)),
        ),
        compiler_params=pltpu.CompilerParams(
            dimension_semantics=("parallel",),
        ),
    )(state, w1, b1, w2, b2, w3, b3)

    # Tiny layout plumbing: lane-dense (1, padded_B) slab -> (B, 1).
    return out[0, :B].reshape(B, 1)


def init_params(key, state_dim, dims):
    """Deterministic synthetic init matching torch nn.Linear shapes ([out,in] / [out])."""
    sizes = [state_dim, *dims, 1]
    n_layers = len(sizes) - 1
    params = {}
    keys = jax.random.split(key, 2 * n_layers)
    for li in range(n_layers):
        fan_in, fan_out = sizes[li], sizes[li + 1]
        bound = fan_in ** -0.5
        params[f"w{li + 1}"] = jax.random.uniform(
            keys[2 * li], (fan_out, fan_in), minval=-bound, maxval=bound, dtype=jnp.float32)
        params[f"b{li + 1}"] = jax.random.uniform(
            keys[2 * li + 1], (fan_out,), minval=-bound, maxval=bound, dtype=jnp.float32)
    return params


def reference_forward(state, params):
    h = jnp.maximum(state @ params["w1"].T + params["b1"], 0.0)
    h = jnp.maximum(h @ params["w2"].T + params["b2"], 0.0)
    return h @ params["w3"].T + params["b3"]


if __name__ == "__main__":
    # Small shapes consistent with CriticPPO(dims=[64, 64], state_dim=32, _action_dim=4)
    state_dim = 32
    dims = [64, 64]

    key = jax.random.PRNGKey(0)
    k_state1, k_state2, k_params = jax.random.split(key, 3)
    params = init_params(k_params, state_dim, dims)

    # Case 1: tiny batch (padded to one 128-row tile), f32 MXU-input path, tight tolerance.
    state_small = jax.random.normal(k_state1, (8, state_dim), dtype=jnp.float32)
    out_small = jax.block_until_ready(
        critic_ppo_forward(state_small, params, compute_dtype=None))
    ref_small = reference_forward(state_small, params)
    assert out_small.shape == (8, 1)
    assert jnp.allclose(out_small, ref_small, atol=1e-5, rtol=1e-5), "f32 small-batch mismatch"

    # Case 2: batch not divisible by the tile, default bf16 MXU-input path.
    state_big = jax.random.normal(k_state2, (300, state_dim), dtype=jnp.float32)
    ref_big = reference_forward(state_big, params)
    out_bf16 = jax.block_until_ready(critic_ppo_forward(state_big, params))
    assert out_bf16.shape == (300, 1)
    assert jnp.allclose(out_bf16, ref_big, atol=5e-2, rtol=5e-2), "bf16 path mismatch"

    # Case 3: same batch through the f32 path for a tight check on padding handling.
    out_big_f32 = jax.block_until_ready(
        critic_ppo_forward(state_big, params, compute_dtype=None))
    assert jnp.allclose(out_big_f32, ref_big, atol=1e-5, rtol=1e-5), "f32 big-batch mismatch"

    print("KERNEL_OK")
</pallas_src>

<mosaic_0001>
module attributes {stable_mosaic.version = 11 : i64} {
  func.func @critic_ppo_kernel(%arg0: i32, %arg1: memref<128x32xf32, #tpu.memory_space<vmem>>, %arg2: memref<64x32xf32, #tpu.memory_space<vmem>>, %arg3: memref<64x1xf32, #tpu.memory_space<vmem>>, %arg4: memref<64x64xf32, #tpu.memory_space<vmem>>, %arg5: memref<64x1xf32, #tpu.memory_space<vmem>>, %arg6: memref<1x64xf32, #tpu.memory_space<vmem>>, %arg7: memref<1xf32, #tpu.memory_space<smem>>, %arg8: memref<1x128xf32, #tpu.memory_space<vmem>>) attributes {dimension_semantics = [#tpu.dimension_semantics<parallel>], iteration_bounds = array<i64: 1>, scalar_prefetch = 0 : i64, scratch_operands = 0 : i64, tpu.core_type = #tpu.core_type<tc>, window_params = [{transform_indices = @transform_0, window_bounds = array<i64: 128, 32>}, {pipeline_mode = #tpu.pipeline_mode<synchronous>, transform_indices = @transform_1, window_bounds = array<i64: 64, 32>}, {pipeline_mode = #tpu.pipeline_mode<synchronous>, transform_indices = @transform_2, window_bounds = array<i64: 64, 1>}, {pipeline_mode = #tpu.pipeline_mode<synchronous>, transform_indices = @transform_3, window_bounds = array<i64: 64, 64>}, {pipeline_mode = #tpu.pipeline_mode<synchronous>, transform_indices = @transform_4, window_bounds = array<i64: 64, 1>}, {pipeline_mode = #tpu.pipeline_mode<synchronous>, transform_indices = @transform_5, window_bounds = array<i64: 1, 64>}, {transform_indices = @transform_6, window_bounds = array<i64: 1>}, {transform_indices = @transform_7, window_bounds = array<i64: 1, 128>}]} {
    %c0 = arith.constant 0 : index
    %c0_0 = arith.constant 0 : index
    %0 = vector.load %arg1[%c0, %c0_0] : memref<128x32xf32, #tpu.memory_space<vmem>>, vector<128x32xf32>
    %1 = tpu.transpose %0, [1, 0] : vector<128x32xf32> -> vector<32x128xf32>
    %c0_1 = arith.constant 0 : index
    %c0_2 = arith.constant 0 : index
    %2 = vector.load %arg2[%c0_1, %c0_2] : memref<64x32xf32, #tpu.memory_space<vmem>>, vector<64x32xf32>
    %cst = arith.constant dense<0.000000e+00> : vector<64x128xf32>
    %3 = tpu.matmul %2, %1, %cst {dimension_numbers = #tpu.dot_dimension_numbers<[1], [0], [0], [1], [0, 0, 1, 1], [], []>} : vector<64x32xf32>, vector<32x128xf32>, vector<64x128xf32> -> vector<64x128xf32>
    %c0_3 = arith.constant 0 : index
    %c0_4 = arith.constant 0 : index
    %4 = vector.load %arg3[%c0_3, %c0_4] : memref<64x1xf32, #tpu.memory_space<vmem>>, vector<64x1xf32>
    %5 = vector.broadcast %4 : vector<64x1xf32> to vector<64x128xf32>
    %6 = arith.addf %3, %5 : vector<64x128xf32>
    %cst_5 = arith.constant 0.000000e+00 : f32
    %7 = vector.broadcast %cst_5 : f32 to vector<64x128xf32>
    %8 = arith.maximumf %6, %7 : vector<64x128xf32>
    %c0_6 = arith.constant 0 : index
    %c0_7 = arith.constant 0 : index
    %9 = vector.load %arg4[%c0_6, %c0_7] : memref<64x64xf32, #tpu.memory_space<vmem>>, vector<64x64xf32>
    %cst_8 = arith.constant dense<0.000000e+00> : vector<64x128xf32>
    %10 = tpu.matmul %9, %8, %cst_8 {dimension_numbers = #tpu.dot_dimension_numbers<[1], [0], [0], [1], [0, 0, 1, 1], [], []>} : vector<64x64xf32>, vector<64x128xf32>, vector<64x128xf32> -> vector<64x128xf32>
    %c0_9 = arith.constant 0 : index
    %c0_10 = arith.constant 0 : index
    %11 = vector.load %arg5[%c0_9, %c0_10] : memref<64x1xf32, #tpu.memory_space<vmem>>, vector<64x1xf32>
    %12 = vector.broadcast %11 : vector<64x1xf32> to vector<64x128xf32>
    %13 = arith.addf %10, %12 : vector<64x128xf32>
    %cst_11 = arith.constant 0.000000e+00 : f32
    %14 = vector.broadcast %cst_11 : f32 to vector<64x128xf32>
    %15 = arith.maximumf %13, %14 : vector<64x128xf32>
    %c0_12 = arith.constant 0 : index
    %c0_13 = arith.constant 0 : index
    %16 = vector.load %arg6[%c0_12, %c0_13] : memref<1x64xf32, #tpu.memory_space<vmem>>, vector<1x64xf32>
    %cst_14 = arith.constant dense<0.000000e+00> : vector<1x128xf32>
    %17 = tpu.matmul %16, %15, %cst_14 {dimension_numbers = #tpu.dot_dimension_numbers<[1], [0], [0], [1], [0, 0, 1, 1], [], []>} : vector<1x64xf32>, vector<64x128xf32>, vector<1x128xf32> -> vector<1x128xf32>
    %c0_15 = arith.constant 0 : index
    %18 = memref.load %arg7[%c0_15] : memref<1xf32, #tpu.memory_space<smem>>
    %19 = vector.broadcast %18 : f32 to vector<1x128xf32>
    %20 = arith.addf %17, %19 : vector<1x128xf32>
    %c0_16 = arith.constant 0 : index
    %c0_17 = arith.constant 0 : index
    %21 = vector.load %arg8[%c0_16, %c0_17] : memref<1x128xf32, #tpu.memory_space<vmem>>, vector<1x128xf32>
    tpu.vector_store %arg8[%c0_16, %c0_17], %20 {strides = array<i32>} : memref<1x128xf32, #tpu.memory_space<vmem>>, vector<1x128xf32>,
    return
  }
  func.func @transform_0(%arg0: i32) -> (i32, i32) {
    %c0_i32 = arith.constant 0 : i32
    %c0_i32_0 = arith.constant 0 : i32
    return %arg0, %c0_i32 : i32, i32
  }
  func.func @transform_1(%arg0: i32) -> (i32, i32) {
    %c0_i32 = arith.constant 0 : i32
    %c0_i32_0 = arith.constant 0 : i32
    %c0_i32_1 = arith.constant 0 : i32
    return %c0_i32, %c0_i32_0 : i32, i32
  }
  func.func @transform_2(%arg0: i32) -> (i32, i32) {
    %c0_i32 = arith.constant 0 : i32
    %c0_i32_0 = arith.constant 0 : i32
    %c0_i32_1 = arith.constant 0 : i32
    return %c0_i32, %c0_i32_0 : i32, i32
  }
  func.func @transform_3(%arg0: i32) -> (i32, i32) {
    %c0_i32 = arith.constant 0 : i32
    %c0_i32_0 = arith.constant 0 : i32
    %c0_i32_1 = arith.constant 0 : i32
    return %c0_i32, %c0_i32_0 : i32, i32
  }
  func.func @transform_4(%arg0: i32) -> (i32, i32) {
    %c0_i32 = arith.constant 0 : i32
    %c0_i32_0 = arith.constant 0 : i32
    %c0_i32_1 = arith.constant 0 : i32
    return %c0_i32, %c0_i32_0 : i32, i32
  }
  func.func @transform_5(%arg0: i32) -> (i32, i32) {
    %c0_i32 = arith.constant 0 : i32
    %c0_i32_0 = arith.constant 0 : i32
    %c0_i32_1 = arith.constant 0 : i32
    return %c0_i32, %c0_i32_0 : i32, i32
  }
  func.func @transform_6(%arg0: i32) -> i32 {
    %c0_i32 = arith.constant 0 : i32
    %c0_i32_0 = arith.constant 0 : i32
    return %c0_i32 : i32
  }
  func.func @transform_7(%arg0: i32) -> (i32, i32) {
    %c0_i32 = arith.constant 0 : i32
    %c0_i32_0 = arith.constant 0 : i32
    return %c0_i32, %arg0 : i32, i32
  }
}

</mosaic_0001>

<llo_original>
// kernel: tpu_custom_call.1
$region0: #{tpu_custom_call.1}
  #allocation0 [shape = 'u32[]', space=smem, size = 0x4, offset = 0x4, fixed_abs, tag = 'smem constant byte address 0x4 - core index']
  #allocation1 [shape = 'u32[144,128]{1,0:T(1,128)}', space=vmem, size = 0x12000, scoped, tag = 'internal scratch']
  #allocation2 [shape = 'f32[1]{0:T(128)S(6)}', space=smem, size = 0x200, scoped, tag = 'scoped memory for tpu_custom_call.1']
  %s0 = inlined_call_operand.vmem [shape: f32[128,32], index: 0, kind: input, shape index: {}]
  %s1 = inlined_call_operand.vmem [shape: f32[64,32], index: 1, kind: input, shape index: {}]
  %s2 = inlined_call_operand.vmem [shape: f32[64,1], index: 2, kind: input, shape index: {}]
  %s3 = inlined_call_operand.vmem [shape: f32[64,64], index: 3, kind: input, shape index: {}]
  %s4 = inlined_call_operand.vmem [shape: f32[64,1], index: 4, kind: input, shape index: {}]
  %s5 = inlined_call_operand.vmem [shape: f32[1,64], index: 5, kind: input, shape index: {}]
  %s6 = inlined_call_operand.<no memory space> [shape: f32[1], index: 6, kind: input, shape index: {}]
  %s7 = inlined_call_operand.hbm [shape: f32[1,128], index: 7, kind: output, shape index: {}]
  %s8 = sld [smem:[#allocation0]]
  $region38: #{tpu_custom_call.1} parent=0
    _
  %s10 = ssub.s32 1, %s8
  %s11 = scalar_select 0, %s10, %s8
  %12 = sst [smem:[#allocation2]] %s6
  $region1: #{tpu_custom_call.1} parent=0
    #allocation3 [shape = 'u8[512]{0}', space=vmem, size = 0x400, scoped, tag = 'output window, operand 0, single buffered']
    #allocation4 [shape = 's32[1]{0}', space=sflag, size = 0x4, scoped, tag = 'scoped memory for tpu_custom_call.1']
    %13 = vsyncpa [#allocation4], 0
    // Predicated region
    $region2: #{tpu_custom_call.1} parent=1 // pred_check
      _
    $region3: #{tpu_custom_call.1} parent=1 // pred_check_branch
      %15 = sbr.rel (0) target = $region5
    $region4: #{tpu_custom_call.1} parent=1 // pred_region
      _
    $region5: #{tpu_custom_call.1} parent=1 // pred_fallthru
      _
    // Predicated region
    $region6: #{tpu_custom_call.1} parent=1 // pred_check
      _
    $region7: #{tpu_custom_call.1} parent=1 // pred_check_branch
      %17 = sbr.rel (0) target = $region9
    $region8: #{tpu_custom_call.1} parent=1 // pred_region
      _
    $region9: #{tpu_custom_call.1} parent=1 // pred_fallthru
      _
    // Predicated region
    $region10: #{tpu_custom_call.1} parent=1 // pred_check
      _
    $region11: #{tpu_custom_call.1} parent=1 // pred_check_branch
      %19 = sbr.rel (0) target = $region13
    $region12: #{tpu_custom_call.1} parent=1 // pred_region
      _
    $region13: #{tpu_custom_call.1} parent=1 // pred_fallthru
      _
    // Predicated region
    $region14: #{tpu_custom_call.1} parent=1 // pred_check
      _
    $region15: #{tpu_custom_call.1} parent=1 // pred_check_branch
      %21 = sbr.rel (0) target = $region17
    $region16: #{tpu_custom_call.1} parent=1 // pred_region
      _
    $region17: #{tpu_custom_call.1} parent=1 // pred_fallthru
      _
    // Predicated region
    $region18: #{tpu_custom_call.1} parent=1 // pred_check
      _
    $region19: #{tpu_custom_call.1} parent=1 // pred_check_branch
      %23 = sbr.rel (0) target = $region21
    $region20: #{tpu_custom_call.1} parent=1 // pred_region
      _
    $region21: #{tpu_custom_call.1} parent=1 // pred_fallthru
      _
    // Predicated region
    $region22: #{tpu_custom_call.1} parent=1 // pred_check
      _
    $region23: #{tpu_custom_call.1} parent=1 // pred_check_branch
      %25 = sbr.rel (0) target = $region25
    $region24: #{tpu_custom_call.1} parent=1 // pred_region
      _
    $region25: #{tpu_custom_call.1} parent=1 // pred_fallthru
      _
    // Predicated region
    $region26: #{tpu_custom_call.1} parent=1 // pred_check
      _
    $region27: #{tpu_custom_call.1} parent=1 // pred_check_branch
      %27 = sbr.rel (0) target = $region29
    $region28: #{tpu_custom_call.1} parent=1 // pred_region
      _
    $region29: #{tpu_custom_call.1} parent=1 // pred_fallthru
      _
    %v28 = vld [vmem:[%s0] sm:$0xff]
    %v29 = vld [vmem:[%s0 + $0x8] sm:$0xff]
    %v30 = vld [vmem:[%s0 + $0x10] sm:$0xff]
    %v31 = vld [vmem:[%s0 + $0x18] sm:$0xff]
    %v32 = vld [vmem:[%s0 + $0x20] sm:$0xff]
    %v33 = vld [vmem:[%s0 + $0x28] sm:$0xff]
    %v34 = vld [vmem:[%s0 + $0x30] sm:$0xff]
    %v35 = vld [vmem:[%s0 + $0x38] sm:$0xff]
    %v36 = vld [vmem:[%s0 + $0x40] sm:$0xff]
    %v37 = vld [vmem:[%s0 + $0x48] sm:$0xff]
    %v38 = vld [vmem:[%s0 + $0x50] sm:$0xff]
    %v39 = vld [vmem:[%s0 + $0x58] sm:$0xff]
    %v40 = vld [vmem:[%s0 + $0x60] sm:$0xff]
    %v41 = vld [vmem:[%s0 + $0x68] sm:$0xff]
    %v42 = vld [vmem:[%s0 + $0x70] sm:$0xff]
    %v43 = vld [vmem:[%s0 + $0x78] sm:$0xff]
    %v44 = vld [vmem:[%s1] sm:$0xff]
    %v45 = vld [vmem:[%s1 + $0x8] sm:$0xff]
    %v46 = vld [vmem:[%s1 + $0x10] sm:$0xff]
    %v47 = vld [vmem:[%s1 + $0x18] sm:$0xff]
    %v48 = vld [vmem:[%s1 + $0x20] sm:$0xff]
    %v49 = vld [vmem:[%s1 + $0x28] sm:$0xff]
    %v50 = vld [vmem:[%s1 + $0x30] sm:$0xff]
    %v51 = vld [vmem:[%s1 + $0x38] sm:$0xff]
    %v52 = vld [vmem:[%s2] sm:$0xff]
    %v53 = vld [vmem:[%s2 + $0x8] sm:$0xff]
    %v54 = vld [vmem:[%s2 + $0x10] sm:$0xff]
    %v55 = vld [vmem:[%s2 + $0x18] sm:$0xff]
    %v56 = vld [vmem:[%s2 + $0x20] sm:$0xff]
    %v57 = vld [vmem:[%s2 + $0x28] sm:$0xff]
    %v58 = vld [vmem:[%s2 + $0x30] sm:$0xff]
    %v59 = vld [vmem:[%s2 + $0x38] sm:$0xff]
    %61 = vset.pattern.permute.xlu0 0
    %62 = vperm.xlu0 %61, %v52
    %v63 = vpop.permute.xlu0 %62
    %66 = vset.pattern.permute.xlu0 0
    %67 = vperm.xlu0 %66, %v53
    %v68 = vpop.permute.xlu0 %67
    %71 = vset.pattern.permute.xlu0 0
    %72 = vperm.xlu0 %71, %v54
    %v73 = vpop.permute.xlu0 %72
    %76 = vset.pattern.permute.xlu0 0
    %77 = vperm.xlu0 %76, %v55
    %v78 = vpop.permute.xlu0 %77
    %81 = vset.pattern.permute.xlu0 0
    %82 = vperm.xlu0 %81, %v56
    %v83 = vpop.permute.xlu0 %82
    %86 = vset.pattern.permute.xlu0 0
    %87 = vperm.xlu0 %86, %v57
    %v88 = vpop.permute.xlu0 %87
    %91 = vset.pattern.permute.xlu0 0
    %92 = vperm.xlu0 %91, %v58
    %v93 = vpop.permute.xlu0 %92
    %96 = vset.pattern.permute.xlu0 0
    %97 = vperm.xlu0 %96, %v59
    %v98 = vpop.permute.xlu0 %97
    %vm100 = vcmask 261120
    %v102 = vsel %vm100, %v44, 0
    %v105 = vsel %vm100, %v45, 0
    %v108 = vsel %vm100, %v46, 0
    %v111 = vsel %vm100, %v47, 0
    %v114 = vsel %vm100, %v48, 0
    %v117 = vsel %vm100, %v49, 0
    %v120 = vsel %vm100, %v50, 0
    %v123 = vsel %vm100, %v51, 0
    %v126 = vsel %vm100, %v28, 0
    %v129 = vsel %vm100, %v29, 0
    %v132 = vsel %vm100, %v30, 0
    %v135 = vsel %vm100, %v31, 0
    %v138 = vsel %vm100, %v32, 0
    %v141 = vsel %vm100, %v33, 0
    %v144 = vsel %vm100, %v34, 0
    %v147 = vsel %vm100, %v35, 0
    %v150 = vsel %vm100, %v36, 0
    %v153 = vsel %vm100, %v37, 0
    %v156 = vsel %vm100, %v38, 0
    %v159 = vsel %vm100, %v39, 0
    %v162 = vsel %vm100, %v40, 0
    %v165 = vsel %vm100, %v41, 0
    %v168 = vsel %vm100, %v42, 0
    %v171 = vsel %vm100, %v43, 0
    %173 = vmatprep.subr.mxu0 0.0
    %174 = vmatpush1.xpose.msra.mxu0 %v126
    %175 = vmatprep.subr.mxu0 0.0
    %176 = vmatpush1.xpose.msra.mxu0 %v129
    %177 = vmatprep.subr.mxu0 0.0
    %178 = vmatpush1.xpose.msra.mxu0 %v132
    %179 = vmatprep.subr.mxu0 0.0
    %180 = vmatpush1.xpose.msra.mxu0 %v135
    %181 = vmatprep.subr.mxu0 0.0
    %182 = vmatpush1.xpose.msra.mxu0 %v138
    %183 = vmatprep.subr.mxu0 0.0
    %184 = vmatpush1.xpose.msra.mxu0 %v141
    %185 = vmatprep.subr.mxu0 0.0
    %186 = vmatpush1.xpose.msra.mxu0 %v144
    %187 = vmatprep.subr.mxu0 0.0
    %188 = vmatpush1.xpose.msra.mxu0 %v147
    %189 = vmatprep.subr.mxu0 0.0
    %190 = vmatpush1.xpose.msra.mxu0 %v150
    %191 = vmatprep.subr.mxu0 0.0
    %192 = vmatpush1.xpose.msra.mxu0 %v153
    %193 = vmatprep.subr.mxu0 0.0
    %194 = vmatpush1.xpose.msra.mxu0 %v156
    %195 = vmatprep.subr.mxu0 0.0
    %196 = vmatpush1.xpose.msra.mxu0 %v159
    %197 = vmatprep.subr.mxu0 0.0
    %198 = vmatpush1.xpose.msra.mxu0 %v162
    %199 = vmatprep.subr.mxu0 0.0
    %200 = vmatpush1.xpose.msra.mxu0 %v165
    %201 = vmatprep.subr.mxu0 0.0
    %202 = vmatpush1.xpose.msra.mxu0 %v168
    %203 = vmatprep.subr.mxu0 0.0
    %204 = vmatpush1.xpose.msra.mxu0 %v171
    %205 = vmatprep.subr.mxu0 0.0
    %206 = vmatpush1.xpose.msra.mxu0 0.0
    %207 = vmatprep.subr.mxu0 0.0
    %208 = vmatpush1.xpose.msra.mxu0 0.0
    %209 = vmatprep.subr.mxu0 0.0
    %210 = vmatpush1.xpose.msra.mxu0 0.0
    %211 = vmatprep.subr.mxu0 0.0
    %212 = vmatpush1.xpose.msra.mxu0 0.0
    %213 = vmatprep.subr.mxu0 0.0
    %214 = vmatpush1.xpose.msra.mxu0 0.0
    %215 = vmatprep.subr.mxu0 0.0
    %216 = vmatpush1.xpose.msra.mxu0 0.0
    %217 = vmatprep.subr.mxu0 0.0
    %218 = vmatpush1.xpose.msra.mxu0 0.0
    %219 = vmatprep.subr.mxu0 0.0
    %220 = vmatpush1.xpose.msra.mxu0 0.0
    %221 = vmatprep.subr.mxu0 0.0
    %222 = vmatpush1.xpose.msra.mxu0 0.0
    %223 = vmatprep.subr.mxu0 0.0
    %224 = vmatpush1.xpose.msra.mxu0 0.0
    %225 = vmatprep.subr.mxu0 0.0
    %226 = vmatpush1.xpose.msra.mxu0 0.0
    %227 = vmatprep.subr.mxu0 0.0
    %228 = vmatpush1.xpose.msra.mxu0 0.0
    %229 = vmatprep.subr.mxu0 0.0
    %230 = vmatpush1.xpose.msra.mxu0 0.0
    %231 = vmatprep.subr.mxu0 0.0
    %232 = vmatpush1.xpose.msra.mxu0 0.0
    %233 = vmatprep.subr.mxu0 0.0
    %234 = vmatpush1.xpose.msra.mxu0 0.0
    %235 = vmatprep.subr.mxu0 0.0
    %236 = vmatpush1.xpose.msra.mxu0 0.0
    %237 = vmatprep.mubr.f32.mxu0 0.0
    %238 = vmatmul.mubr.f32.gmra.mrb[0].mxu0 %v102
    %v239 = vpop.f32.mrb[0].mxu0
    %v240 = vadd.f32 %v63, %v239
    %v241 = vpop.f32.mrb[0].mxu0
    %242 = vmatprep.mubr.f32.mxu0 0.0
    %243 = vmatmul.mubr.f32.gmra.mrb[0].mxu0 %v105
    %v244 = vpop.f32.mrb[0].mxu0
    %v245 = vadd.f32 %v68, %v244
    %v246 = vpop.f32.mrb[0].mxu0
    %247 = vmatprep.mubr.f32.mxu0 0.0
    %248 = vmatmul.mubr.f32.gmra.mrb[0].mxu0 %v108
    %v249 = vpop.f32.mrb[0].mxu0
    %v250 = vadd.f32 %v73, %v249
    %v251 = vpop.f32.mrb[0].mxu0
    %252 = vmatprep.mubr.f32.mxu0 0.0
    %253 = vmatmul.mubr.f32.gmra.mrb[0].mxu0 %v111
    %v254 = vpop.f32.mrb[0].mxu0
    %v255 = vadd.f32 %v78, %v254
    %v256 = vpop.f32.mrb[0].mxu0
    %257 = vmatprep.mubr.f32.mxu0 0.0
    %258 = vmatmul.mubr.f32.gmra.mrb[0].mxu0 %v114
    %v259 = vpop.f32.mrb[0].mxu0
    %v260 = vadd.f32 %v83, %v259
    %v261 = vpop.f32.mrb[0].mxu0
    %262 = vmatprep.mubr.f32.mxu0 0.0
    %263 = vmatmul.mubr.f32.gmra.mrb[0].mxu0 %v117
    %v264 = vpop.f32.mrb[0].mxu0
    %v265 = vadd.f32 %v88, %v264
    %v266 = vpop.f32.mrb[0].mxu0
    %267 = vmatprep.mubr.f32.mxu0 0.0
    %268 = vmatmul.mubr.f32.gmra.mrb[0].mxu0 %v120
    %v269 = vpop.f32.mrb[0].mxu0
    %v270 = vadd.f32 %v93, %v269
    %v271 = vpop.f32.mrb[0].mxu0
    %272 = vmatprep.mubr.f32.mxu0 0.0
    %273 = vmatmul.mubr.f32.gmra.mrb[0].mxu0 %v123
    %v274 = vpop.f32.mrb[0].mxu0
    %v275 = vadd.f32 %v98, %v274
    %v276 = vpop.f32.mrb[0].mxu0
    %277 = vdwg.mxu0
    %v278 = vmax.f32 %v240, 0.0
    %v279 = vmax.f32 %v245, 0.0
    %v280 = vmax.f32 %v250, 0.0
    %v281 = vmax.f32 %v255, 0.0
    %v282 = vmax.f32 %v260, 0.0
    %v283 = vmax.f32 %v265, 0.0
    %v284 = vmax.f32 %v270, 0.0
    %v285 = vmax.f32 %v275, 0.0
    %v286 = vld [vmem:[%s3] sm:$0xff]
    %v287 = vld [vmem:[%s3 + $0x8] sm:$0xff]
    %v288 = vld [vmem:[%s3 + $0x10] sm:$0xff]
    %v289 = vld [vmem:[%s3 + $0x18] sm:$0xff]
    %v290 = vld [vmem:[%s3 + $0x20] sm:$0xff]
    %v291 = vld [vmem:[%s3 + $0x28] sm:$0xff]
    %v292 = vld [vmem:[%s3 + $0x30] sm:$0xff]
    %v293 = vld [vmem:[%s3 + $0x38] sm:$0xff]
    %v294 = vld [vmem:[%s4] sm:$0xff]
    %v295 = vld [vmem:[%s4 + $0x8] sm:$0xff]
    %v296 = vld [vmem:[%s4 + $0x10] sm:$0xff]
    %v297 = vld [vmem:[%s4 + $0x18] sm:$0xff]
    %v298 = vld [vmem:[%s4 + $0x20] sm:$0xff]
    %v299 = vld [vmem:[%s4 + $0x28] sm:$0xff]
    %v300 = vld [vmem:[%s4 + $0x30] sm:$0xff]
    %v301 = vld [vmem:[%s4 + $0x38] sm:$0xff]
    %303 = vset.pattern.permute.xlu0 0
    %304 = vperm.xlu0 %303, %v294
    %v305 = vpop.permute.xlu0 %304
    %308 = vset.pattern.permute.xlu0 0
    %309 = vperm.xlu0 %308, %v295
    %v310 = vpop.permute.xlu0 %309
    %313 = vset.pattern.permute.xlu0 0
    %314 = vperm.xlu0 %313, %v296
    %v315 = vpop.permute.xlu0 %314
    %318 = vset.pattern.permute.xlu0 0
    %319 = vperm.xlu0 %318, %v297
    %v320 = vpop.permute.xlu0 %319
    %323 = vset.pattern.permute.xlu0 0
    %324 = vperm.xlu0 %323, %v298
    %v325 = vpop.permute.xlu0 %324
    %328 = vset.pattern.permute.xlu0 0
    %329 = vperm.xlu0 %328, %v299
    %v330 = vpop.permute.xlu0 %329
    %333 = vset.pattern.permute.xlu0 0
    %334 = vperm.xlu0 %333, %v300
    %v335 = vpop.permute.xlu0 %334
    %338 = vset.pattern.permute.xlu0 0
    %339 = vperm.xlu0 %338, %v301
    %v340 = vpop.permute.xlu0 %339
    %vm342 = vcmask 523264
    %v344 = vsel %vm342, %v286, 0
    %v347 = vsel %vm342, %v287, 0
    %v350 = vsel %vm342, %v288, 0
    %v353 = vsel %vm342, %v289, 0
    %v356 = vsel %vm342, %v290, 0
    %v359 = vsel %vm342, %v291, 0
    %v362 = vsel %vm342, %v292, 0
    %v365 = vsel %vm342, %v293, 0
    %367 = vmatprep.subr.mxu0 0.0
    %368 = vmatpush1.msra.mxu0 %v278
    %369 = vmatprep.subr.mxu0 0.0
    %370 = vmatpush1.msra.mxu0 %v279
    %371 = vmatprep.subr.mxu0 0.0
    %372 = vmatpush1.msra.mxu0 %v280
    %373 = vmatprep.subr.mxu0 0.0
    %374 = vmatpush1.msra.mxu0 %v281
    %375 = vmatprep.subr.mxu0 0.0
    %376 = vmatpush1.msra.mxu0 %v282
    %377 = vmatprep.subr.mxu0 0.0
    %378 = vmatpush1.msra.mxu0 %v283
    %379 = vmatprep.subr.mxu0 0.0
    %380 = vmatpush1.msra.mxu0 %v284
    %381 = vmatprep.subr.mxu0 0.0
    %382 = vmatpush1.msra.mxu0 %v285
    %383 = vmatprep.subr.mxu0 0.0
    %384 = vmatpush1.msra.mxu0 0.0
    %385 = vmatprep.subr.mxu0 0.0
    %386 = vmatpush1.msra.mxu0 0.0
    %387 = vmatprep.subr.mxu0 0.0
    %388 = vmatpush1.msra.mxu0 0.0
    %389 = vmatprep.subr.mxu0 0.0
    %390 = vmatpush1.msra.mxu0 0.0
    %391 = vmatprep.subr.mxu0 0.0
    %392 = vmatpush1.msra.mxu0 0.0
    %393 = vmatprep.subr.mxu0 0.0
    %394 = vmatpush1.msra.mxu0 0.0
    %395 = vmatprep.subr.mxu0 0.0
    %396 = vmatpush1.msra.mxu0 0.0
    %397 = vmatprep.subr.mxu0 0.0
    %398 = vmatpush1.msra.mxu0 0.0
    %399 = vmatprep.subr.mxu0 0.0
    %400 = vmatpush1.msra.mxu0 0.0
    %401 = vmatprep.subr.mxu0 0.0
    %402 = vmatpush1.msra.mxu0 0.0
    %403 = vmatprep.subr.mxu0 0.0
    %404 = vmatpush1.msra.mxu0 0.0
    %405 = vmatprep.subr.mxu0 0.0
    %406 = vmatpush1.msra.mxu0 0.0
    %407 = vmatprep.subr.mxu0 0.0
    %408 = vmatpush1.msra.mxu0 0.0
    %409 = vmatprep.subr.mxu0 0.0
    %410 = vmatpush1.msra.mxu0 0.0
    %411 = vmatprep.subr.mxu0 0.0
    %412 = vmatpush1.msra.mxu0 0.0
    %413 = vmatprep.subr.mxu0 0.0
    %414 = vmatpush1.msra.mxu0 0.0
    %415 = vmatprep.subr.mxu0 0.0
    %416 = vmatpush1.msra.mxu0 0.0
    %417 = vmatprep.subr.mxu0 0.0
    %418 = vmatpush1.msra.mxu0 0.0
    %419 = vmatprep.subr.mxu0 0.0
    %420 = vmatpush1.msra.mxu0 0.0
    %421 = vmatprep.subr.mxu0 0.0
    %422 = vmatpush1.msra.mxu0 0.0
    %423 = vmatprep.subr.mxu0 0.0
    %424 = vmatpush1.msra.mxu0 0.0
    %425 = vmatprep.subr.mxu0 0.0
    %426 = vmatpush1.msra.mxu0 0.0
    %427 = vmatprep.subr.mxu0 0.0
    %428 = vmatpush1.msra.mxu0 0.0
    %429 = vmatprep.subr.mxu0 0.0
    %430 = vmatpush1.msra.mxu0 0.0
    %431 = vmatprep.mubr.f32.mxu0 0.0
    %432 = vmatmul.mubr.f32.gmra.mrb[0].mxu0 %v344
    %v433 = vpop.f32.mrb[0].mxu0
    %v434 = vadd.f32 %v305, %v433
    %v435 = vpop.f32.mrb[0].mxu0
    %436 = vmatprep.mubr.f32.mxu0 0.0
    %437 = vmatmul.mubr.f32.gmra.mrb[0].mxu0 %v347
    %v438 = vpop.f32.mrb[0].mxu0
    %v439 = vadd.f32 %v310, %v438
    %v440 = vpop.f32.mrb[0].mxu0
    %441 = vmatprep.mubr.f32.mxu0 0.0
    %442 = vmatmul.mubr.f32.gmra.mrb[0].mxu0 %v350
    %v443 = vpop.f32.mrb[0].mxu0
    %v444 = vadd.f32 %v315, %v443
    %v445 = vpop.f32.mrb[0].mxu0
    %446 = vmatprep.mubr.f32.mxu0 0.0
    %447 = vmatmul.mubr.f32.gmra.mrb[0].mxu0 %v353
    %v448 = vpop.f32.mrb[0].mxu0
    %v449 = vadd.f32 %v320, %v448
    %v450 = vpop.f32.mrb[0].mxu0
    %451 = vmatprep.mubr.f32.mxu0 0.0
    %452 = vmatmul.mubr.f32.gmra.mrb[0].mxu0 %v356
    %v453 = vpop.f32.mrb[0].mxu0
    %v454 = vadd.f32 %v325, %v453
    %v455 = vpop.f32.mrb[0].mxu0
    %456 = vmatprep.mubr.f32.mxu0 0.0
    %457 = vmatmul.mubr.f32.gmra.mrb[0].mxu0 %v359
    %v458 = vpop.f32.mrb[0].mxu0
    %v459 = vadd.f32 %v330, %v458
    %v460 = vpop.f32.mrb[0].mxu0
    %461 = vmatprep.mubr.f32.mxu0 0.0
    %462 = vmatmul.mubr.f32.gmra.mrb[0].mxu0 %v362
    %v463 = vpop.f32.mrb[0].mxu0
    %v464 = vadd.f32 %v335, %v463
    %v465 = vpop.f32.mrb[0].mxu0
    %466 = vmatprep.mubr.f32.mxu0 0.0
    %467 = vmatmul.mubr.f32.gmra.mrb[0].mxu0 %v365
    %v468 = vpop.f32.mrb[0].mxu0
    %v469 = vadd.f32 %v340, %v468
    %v470 = vpop.f32.mrb[0].mxu0
    %471 = vdwg.mxu0
    %v472 = vmax.f32 %v434, 0.0
    %v473 = vmax.f32 %v439, 0.0
    %v474 = vmax.f32 %v444, 0.0
    %v475 = vmax.f32 %v449, 0.0
    %v476 = vmax.f32 %v454, 0.0
    %v477 = vmax.f32 %v459, 0.0
    %v478 = vmax.f32 %v464, 0.0
    %v479 = vmax.f32 %v469, 0.0
    %v480 = vld [vmem:[%s5] sm:$0x1]
    %s481 = sld [smem:[#allocation2]]
    %v482 = vstv %s481
    %v484 = vsel %vm342, %v480, 0
    %486 = vmatprep.subr.mxu0 0.0
    %487 = vmatpush1.msra.mxu0 %v472
    %488 = vmatprep.subr.mxu0 0.0
    %489 = vmatpush1.msra.mxu0 %v473
    %490 = vmatprep.subr.mxu0 0.0
    %491 = vmatpush1.msra.mxu0 %v474
    %492 = vmatprep.subr.mxu0 0.0
    %493 = vmatpush1.msra.mxu0 %v475
    %494 = vmatprep.subr.mxu0 0.0
    %495 = vmatpush1.msra.mxu0 %v476
    %496 = vmatprep.subr.mxu0 0.0
    %497 = vmatpush1.msra.mxu0 %v477
    %498 = vmatprep.subr.mxu0 0.0
    %499 = vmatpush1.msra.mxu0 %v478
    %500 = vmatprep.subr.mxu0 0.0
    %501 = vmatpush1.msra.mxu0 %v479
    %502 = vmatprep.subr.mxu0 0.0
    %503 = vmatpush1.msra.mxu0 0.0
    %504 = vmatprep.subr.mxu0 0.0
    %505 = vmatpush1.msra.mxu0 0.0
    %506 = vmatprep.subr.mxu0 0.0
    %507 = vmatpush1.msra.mxu0 0.0
    %508 = vmatprep.subr.mxu0 0.0
    %509 = vmatpush1.msra.mxu0 0.0
    %510 = vmatprep.subr.mxu0 0.0
    %511 = vmatpush1.msra.mxu0 0.0
    %512 = vmatprep.subr.mxu0 0.0
    %513 = vmatpush1.msra.mxu0 0.0
    %514 = vmatprep.subr.mxu0 0.0
    %515 = vmatpush1.msra.mxu0 0.0
    %516 = vmatprep.subr.mxu0 0.0
    %517 = vmatpush1.msra.mxu0 0.0
    %518 = vmatprep.subr.mxu0 0.0
    %519 = vmatpush1.msra.mxu0 0.0
    %520 = vmatprep.subr.mxu0 0.0
    %521 = vmatpush1.msra.mxu0 0.0
    %522 = vmatprep.subr.mxu0 0.0
    %523 = vmatpush1.msra.mxu0 0.0
    %524 = vmatprep.subr.mxu0 0.0
    %525 = vmatpush1.msra.mxu0 0.0
    %526 = vmatprep.subr.mxu0 0.0
    %527 = vmatpush1.msra.mxu0 0.0
    %528 = vmatprep.subr.mxu0 0.0
    %529 = vmatpush1.msra.mxu0 0.0
    %530 = vmatprep.subr.mxu0 0.0
    %531 = vmatpush1.msra.mxu0 0.0
    %532 = vmatprep.subr.mxu0 0.0
    %533 = vmatpush1.msra.mxu0 0.0
    %534 = vmatprep.subr.mxu0 0.0
    %535 = vmatpush1.msra.mxu0 0.0
    %536 = vmatprep.subr.mxu0 0.0
    %537 = vmatpush1.msra.mxu0 0.0
    %538 = vmatprep.subr.mxu0 0.0
    %539 = vmatpush1.msra.mxu0 0.0
    %540 = vmatprep.subr.mxu0 0.0
    %541 = vmatpush1.msra.mxu0 0.0
    %542 = vmatprep.subr.mxu0 0.0
    %543 = vmatpush1.msra.mxu0 0.0
    %544 = vmatprep.subr.mxu0 0.0
    %545 = vmatpush1.msra.mxu0 0.0
    %546 = vmatprep.subr.mxu0 0.0
    %547 = vmatpush1.msra.mxu0 0.0
    %548 = vmatprep.subr.mxu0 0.0
    %549 = vmatpush1.msra.mxu0 0.0
    %550 = vmatprep.mubr.f32.mxu0 0.0
    %551 = vmatmul.mubr.f32.gmra.mrb[0].mxu0 %v484
    %v552 = vpop.f32.mrb[0].mxu0
    %v553 = vadd.f32 %v482, %v552
    %v554 = vpop.f32.mrb[0].mxu0
    %555 = vdwg.mxu0
    %556 = vst [vmem:[#allocation3] sm:$0x1] %v553
    // Predicated region
    $region30: #{tpu_custom_call.1} parent=1 // pred_check
      _
    $region31: #{tpu_custom_call.1} parent=1 // pred_check_branch
      %558 = sbr.rel (0) target = $region33
    $region32: #{tpu_custom_call.1} parent=1 // pred_region
      %s560 = ssub.s32 16, 16
      %561 = vsyncadd [#allocation4], %s560
      %s563 = sshll.u32 [#allocation3], 4
      %s564 = int_to_ptr.vmem [resolvable:$true] %s563
      %566 = dma.vmem_to_hbm [thread:$0]  %s564, 16, %s7, [#allocation4]
    $region33: #{tpu_custom_call.1} parent=1 // pred_fallthru
      _
    // Predicated region
    $region34: #{tpu_custom_call.1} parent=1 // pred_check
      _
    $region35: #{tpu_custom_call.1} parent=1 // pred_check_branch
      %568 = sbr.rel (0) target = $region37
    $region36: #{tpu_custom_call.1} parent=1 // pred_region
      %569 = dma.done [#allocation4], 16
    $region37: #{tpu_custom_call.1} parent=1 // pred_fallthru
      _
    %570 = vsyncpa [#allocation4], 1

</llo_original>
